<compile_context>
chip_gen: v6e
topology: v6e:2x2x1
jax: 0.10.0
libtpu: 0.0.40
codegen_flags: <defaults>
</compile_context>

<pallas_src>
import jax
import jax.numpy as jnp
from jax.experimental import pallas as pl
from jax.experimental.pallas import tpu as pltpu


def value_net_kernel(x_ref, w1_ref, b1_ref, w2_ref, b2_ref, w3_ref, b3_ref, o_ref):
    # Epilogue (bias-add / ReLU) dtype follows the bias dtype chosen in the
    # wrapper: f32 everywhere, bf16 only for bf16 weights on v6e/v7x.
    ep_dtype = b1_ref.dtype

    # Layer 1: (tb, S) @ (S, H) on the MXU, f32 accumulate; bias + ReLU on VPU.
    x = x_ref[...].astype(w1_ref.dtype)
    h1 = jnp.dot(x, w1_ref[...], preferred_element_type=jnp.float32)
    h1 = jnp.maximum(h1.astype(ep_dtype) + b1_ref[...], 0).astype(w2_ref.dtype)

    # Layer 2: (tb, H) @ (H, H)
    h2 = jnp.dot(h1, w2_ref[...], preferred_element_type=jnp.float32)
    h2 = jnp.maximum(h2.astype(ep_dtype) + b2_ref[...], 0)

    # Layer 3: (tb, H) * (1, H) summed over lanes -> (tb, 1).
    # VPU multiply; pre-add the two 128-lane halves (slice at the lane-tile
    # boundary, layout-clean) so the XLU cross-lane reduce only spans 128 lanes.
    hw = h2.astype(jnp.float32) * w3_ref[...]
    H = hw.shape[-1]
    if H % 256 == 0:
        hw = hw[:, : H // 2] + hw[:, H // 2:]
    v = jnp.sum(hw, axis=-1, keepdims=True) + b3_ref[0, 0]
    o_ref[...] = v.astype(o_ref.dtype)


def _round_up(x, m):
    return ((x + m - 1) // m) * m


def _epilogue_dtype(w_dtype):
    """bf16 epilogue only when weights are bf16 and the chip has a bf16 VALU."""
    if jnp.dtype(w_dtype) != jnp.dtype(jnp.bfloat16):
        return jnp.float32
    try:
        kind = jax.devices()[0].device_kind.lower()
    except Exception:
        return jnp.float32
    return jnp.bfloat16 if ("v6" in kind or "v7" in kind) else jnp.float32


def value_network(state, params, *, tb_max=1024):
    """state: (B, state_dim) float32. params from init_params. Returns (B, 1) f32."""
    w1, b1, w2, b2, w3, b3 = params
    B, state_dim = state.shape
    H = w1.shape[1]  # 256

    ep_dtype = _epilogue_dtype(w1.dtype)
    b1 = b1.reshape(1, H).astype(ep_dtype)
    b2 = b2.reshape(1, H).astype(ep_dtype)
    w3_row = w3.reshape(1, H).astype(jnp.float32)   # final reduce stays f32
    b3 = b3.reshape(1, 1).astype(jnp.float32)

    # --- Batch-tile selection -------------------------------------------
    # Large tiles to amortize the ~0.35 us grid-step overhead; balanced so the
    # ragged tail wastes little work; >= 2 parallel steps when B > 256 so both
    # v7x TensorCores are used. No input padding: the last block's OOB rows are
    # read as garbage and only feed masked-out output rows.
    nt = max(1, pl.cdiv(B, tb_max))
    if B > 256:
        nt = max(nt, 2)
    tb = max(8, _round_up(pl.cdiv(B, nt), 8))
    nt = pl.cdiv(B, tb)

    w_itemsize = jnp.dtype(w1.dtype).itemsize
    b_eff = nt * tb
    flops = 2 * b_eff * (state_dim * H + H * H + H)
    bytes_accessed = (
        B * state_dim * jnp.dtype(state.dtype).itemsize        # input
        + (state_dim * H + H * H) * w_itemsize                  # W1, W2 (resident)
        + 2 * H * jnp.dtype(ep_dtype).itemsize + (H + 1) * 4    # b1, b2, w3_row, b3
        + B * 4                                                  # output
    )

    out = pl.pallas_call(
        value_net_kernel,
        out_shape=jax.ShapeDtypeStruct((B, 1), jnp.float32),
        grid_spec=pltpu.PrefetchScalarGridSpec(
            num_scalar_prefetch=0,
            grid=(nt,),
            in_specs=[
                pl.BlockSpec((tb, state_dim), lambda i: (i, 0)),    # x tile (ragged last)
                pl.BlockSpec((state_dim, H), lambda i: (0, 0)),     # W1 (resident)
                pl.BlockSpec((1, H), lambda i: (0, 0)),             # b1
                pl.BlockSpec((H, H), lambda i: (0, 0)),             # W2 (resident)
                pl.BlockSpec((1, H), lambda i: (0, 0)),             # b2
                pl.BlockSpec((1, H), lambda i: (0, 0)),             # W3 as a row
                pl.BlockSpec(memory_space=pltpu.MemorySpace.SMEM),  # b3 scalar
            ],
            out_specs=pl.BlockSpec((tb, 1), lambda i: (i, 0)),
        ),
        compiler_params=pltpu.CompilerParams(
            dimension_semantics=("parallel",),
        ),
        cost_estimate=pl.CostEstimate(
            flops=flops, transcendentals=0, bytes_accessed=bytes_accessed),
    )(state, w1, b1, w2, b2, w3_row, b3)

    return out


def init_params(key, state_dim, hidden=256):
    """PyTorch nn.Linear default init: U(-1/sqrt(fan_in), 1/sqrt(fan_in)).
    Weights stored as (in, out)."""
    ks = jax.random.split(key, 6)

    def linear(kw, kb, fan_in, fan_out):
        bound = 1.0 / (float(fan_in) ** 0.5)
        w = jax.random.uniform(kw, (fan_in, fan_out), jnp.float32, -bound, bound)
        b = jax.random.uniform(kb, (1, fan_out), jnp.float32, -bound, bound)
        return w, b

    w1, b1 = linear(ks[0], ks[1], state_dim, hidden)
    w2, b2 = linear(ks[2], ks[3], hidden, hidden)
    w3, b3 = linear(ks[4], ks[5], hidden, 1)
    return (w1, b1, w2, b2, w3, b3)


if __name__ == "__main__":
    key = jax.random.PRNGKey(0)
    k_params, k_state = jax.random.split(key)

    state_dim = 32
    params = init_params(k_params, state_dim)

    def reference(x, ps):
        w1, b1, w2, b2, w3, b3 = ps
        h = jnp.maximum(x @ w1 + b1, 0.0)
        h = jnp.maximum(h @ w2 + b2, 0.0)
        return h @ w3 + b3

    # Case 1: ragged batch > 256 -> balanced 2-step parallel grid (2 x 152 rows),
    # no input padding, masked writeback on the tail.
    s1 = jax.random.normal(jax.random.fold_in(k_state, 0), (300, state_dim), jnp.float32)
    v1 = jax.block_until_ready(value_network(s1, params))
    assert v1.shape == (300, 1)
    assert jnp.allclose(v1, reference(s1, params), atol=2e-3, rtol=2e-3)

    # Case 2: tiny batch -> single 8-row tile, ragged read / masked write.
    s2 = jax.random.normal(jax.random.fold_in(k_state, 1), (4, state_dim), jnp.float32)
    v2 = jax.block_until_ready(value_network(s2, params))
    assert v2.shape == (4, 1)
    assert jnp.allclose(v2, reference(s2, params), atol=2e-3, rtol=2e-3)

    # Case 3: bf16 weights on the MXU path (f32 accumulate; bf16 epilogue only
    # on v6e/v7x), looser tolerance vs. the f32 reference.
    w1, b1, w2, b2, w3, b3 = params
    params_bf16 = (w1.astype(jnp.bfloat16), b1, w2.astype(jnp.bfloat16), b2, w3, b3)
    s3 = jax.random.normal(jax.random.fold_in(k_state, 2), (512, state_dim), jnp.float32)
    v3 = jax.block_until_ready(value_network(s3, params_bf16))
    assert v3.shape == (512, 1)
    assert jnp.allclose(v3, reference(s3, params), atol=6e-2, rtol=6e-2)

    print("KERNEL_OK")
</pallas_src>

<mosaic_0001>
module attributes {stable_mosaic.version = 11 : i64} {
  func.func @value_net_kernel(%arg0: i32, %arg1: memref<152x32xf32, #tpu.memory_space<vmem>>, %arg2: memref<32x256xf32, #tpu.memory_space<vmem>>, %arg3: memref<1x256xf32, #tpu.memory_space<vmem>>, %arg4: memref<256x256xf32, #tpu.memory_space<vmem>>, %arg5: memref<1x256xf32, #tpu.memory_space<vmem>>, %arg6: memref<1x256xf32, #tpu.memory_space<vmem>>, %arg7: memref<1x1xf32, #tpu.memory_space<smem>>, %arg8: memref<152x1xf32, #tpu.memory_space<vmem>>) attributes {dimension_semantics = [#tpu.dimension_semantics<parallel>], iteration_bounds = array<i64: 2>, scalar_prefetch = 0 : i64, scratch_operands = 0 : i64, tpu.core_type = #tpu.core_type<tc>, window_params = [{transform_indices = @transform_0, window_bounds = array<i64: 152, 32>}, {pipeline_mode = #tpu.pipeline_mode<synchronous>, transform_indices = @transform_1, window_bounds = array<i64: 32, 256>}, {pipeline_mode = #tpu.pipeline_mode<synchronous>, transform_indices = @transform_2, window_bounds = array<i64: 1, 256>}, {pipeline_mode = #tpu.pipeline_mode<synchronous>, transform_indices = @transform_3, window_bounds = array<i64: 256, 256>}, {pipeline_mode = #tpu.pipeline_mode<synchronous>, transform_indices = @transform_4, window_bounds = array<i64: 1, 256>}, {pipeline_mode = #tpu.pipeline_mode<synchronous>, transform_indices = @transform_5, window_bounds = array<i64: 1, 256>}, {transform_indices = @transform_6, window_bounds = array<i64: 1, 1>}, {transform_indices = @transform_7, window_bounds = array<i64: 152, 1>}]} {
    %c0 = arith.constant 0 : index
    %c0_0 = arith.constant 0 : index
    %0 = vector.load %arg1[%c0, %c0_0] : memref<152x32xf32, #tpu.memory_space<vmem>>, vector<152x32xf32>
    %c0_1 = arith.constant 0 : index
    %c0_2 = arith.constant 0 : index
    %1 = vector.load %arg2[%c0_1, %c0_2] : memref<32x256xf32, #tpu.memory_space<vmem>>, vector<32x256xf32>
    %cst = arith.constant dense<0.000000e+00> : vector<152x256xf32>
    %2 = tpu.matmul %0, %1, %cst {dimension_numbers = #tpu.dot_dimension_numbers<[1], [0], [0], [1], [0, 0, 1, 1], [], []>} : vector<152x32xf32>, vector<32x256xf32>, vector<152x256xf32> -> vector<152x256xf32>
    %c0_3 = arith.constant 0 : index
    %c0_4 = arith.constant 0 : index
    %3 = vector.load %arg3[%c0_3, %c0_4] : memref<1x256xf32, #tpu.memory_space<vmem>>, vector<1x256xf32>
    %4 = vector.broadcast %3 : vector<1x256xf32> to vector<152x256xf32>
    %5 = arith.addf %2, %4 : vector<152x256xf32>
    %cst_5 = arith.constant 0.000000e+00 : f32
    %6 = vector.broadcast %cst_5 : f32 to vector<152x256xf32>
    %7 = arith.maximumf %5, %6 : vector<152x256xf32>
    %c0_6 = arith.constant 0 : index
    %c0_7 = arith.constant 0 : index
    %8 = vector.load %arg4[%c0_6, %c0_7] : memref<256x256xf32, #tpu.memory_space<vmem>>, vector<256x256xf32>
    %cst_8 = arith.constant dense<0.000000e+00> : vector<152x256xf32>
    %9 = tpu.matmul %7, %8, %cst_8 {dimension_numbers = #tpu.dot_dimension_numbers<[1], [0], [0], [1], [0, 0, 1, 1], [], []>} : vector<152x256xf32>, vector<256x256xf32>, vector<152x256xf32> -> vector<152x256xf32>
    %c0_9 = arith.constant 0 : index
    %c0_10 = arith.constant 0 : index
    %10 = vector.load %arg5[%c0_9, %c0_10] : memref<1x256xf32, #tpu.memory_space<vmem>>, vector<1x256xf32>
    %11 = vector.broadcast %10 : vector<1x256xf32> to vector<152x256xf32>
    %12 = arith.addf %9, %11 : vector<152x256xf32>
    %cst_11 = arith.constant 0.000000e+00 : f32
    %13 = vector.broadcast %cst_11 : f32 to vector<152x256xf32>
    %14 = arith.maximumf %12, %13 : vector<152x256xf32>
    %c0_12 = arith.constant 0 : index
    %c0_13 = arith.constant 0 : index
    %15 = vector.load %arg6[%c0_12, %c0_13] : memref<1x256xf32, #tpu.memory_space<vmem>>, vector<1x256xf32>
    %16 = vector.broadcast %15 : vector<1x256xf32> to vector<152x256xf32>
    %17 = arith.mulf %14, %16 : vector<152x256xf32>
    %18 = vector.extract_strided_slice %17 {offsets = [0, 0], sizes = [152, 128], strides = [1, 1]} : vector<152x256xf32> to vector<152x128xf32>
    %19 = vector.extract_strided_slice %17 {offsets = [0, 128], sizes = [152, 128], strides = [1, 1]} : vector<152x256xf32> to vector<152x128xf32>
    %20 = arith.addf %18, %19 : vector<152x128xf32>
    %cst_14 = arith.constant dense<0.000000e+00> : vector<152xf32>
    %21 = vector.multi_reduction <add>, %20, %cst_14 [1] : vector<152x128xf32> to vector<152xf32>
    %22 = vector.shape_cast %21 : vector<152xf32> to vector<152x1xf32>
    %c0_15 = arith.constant 0 : index
    %c0_16 = arith.constant 0 : index
    %23 = memref.load %arg7[%c0_15, %c0_16] : memref<1x1xf32, #tpu.memory_space<smem>>
    %24 = vector.broadcast %23 : f32 to vector<152x1xf32>
    %25 = arith.addf %22, %24 : vector<152x1xf32>
    %c0_17 = arith.constant 0 : index
    %c0_18 = arith.constant 0 : index
    %26 = vector.load %arg8[%c0_17, %c0_18] : memref<152x1xf32, #tpu.memory_space<vmem>>, vector<152x1xf32>
    tpu.vector_store %arg8[%c0_17, %c0_18], %25 {strides = array<i32>} : memref<152x1xf32, #tpu.memory_space<vmem>>, vector<152x1xf32>,
    return
  }
  func.func @transform_0(%arg0: i32) -> (i32, i32) {
    %c0_i32 = arith.constant 0 : i32
    %c0_i32_0 = arith.constant 0 : i32
    return %arg0, %c0_i32 : i32, i32
  }
  func.func @transform_1(%arg0: i32) -> (i32, i32) {
    %c0_i32 = arith.constant 0 : i32
    %c0_i32_0 = arith.constant 0 : i32
    %c0_i32_1 = arith.constant 0 : i32
    return %c0_i32, %c0_i32_0 : i32, i32
  }
  func.func @transform_2(%arg0: i32) -> (i32, i32) {
    %c0_i32 = arith.constant 0 : i32
    %c0_i32_0 = arith.constant 0 : i32
    %c0_i32_1 = arith.constant 0 : i32
    return %c0_i32, %c0_i32_0 : i32, i32
  }
  func.func @transform_3(%arg0: i32) -> (i32, i32) {
    %c0_i32 = arith.constant 0 : i32
    %c0_i32_0 = arith.constant 0 : i32
    %c0_i32_1 = arith.constant 0 : i32
    return %c0_i32, %c0_i32_0 : i32, i32
  }
  func.func @transform_4(%arg0: i32) -> (i32, i32) {
    %c0_i32 = arith.constant 0 : i32
    %c0_i32_0 = arith.constant 0 : i32
    %c0_i32_1 = arith.constant 0 : i32
    return %c0_i32, %c0_i32_0 : i32, i32
  }
  func.func @transform_5(%arg0: i32) -> (i32, i32) {
    %c0_i32 = arith.constant 0 : i32
    %c0_i32_0 = arith.constant 0 : i32
    %c0_i32_1 = arith.constant 0 : i32
    return %c0_i32, %c0_i32_0 : i32, i32
  }
  func.func @transform_6(%arg0: i32) -> (i32, i32) {
    %c0_i32 = arith.constant 0 : i32
    %c0_i32_0 = arith.constant 0 : i32
    %c0_i32_1 = arith.constant 0 : i32
    return %c0_i32, %c0_i32_0 : i32, i32
  }
  func.func @transform_7(%arg0: i32) -> (i32, i32) {
    %c0_i32 = arith.constant 0 : i32
    %c0_i32_0 = arith.constant 0 : i32
    return %arg0, %c0_i32 : i32, i32
  }
}

</mosaic_0001>

<llo_original>
// kernel: tpu_custom_call.1
$region0: #{tpu_custom_call.1}
  #allocation0 [shape = 'u32[]', space=smem, size = 0x4, offset = 0x4, fixed_abs, tag = 'smem constant byte address 0x4 - core index']
  #allocation1 [shape = 'u32[144,128]{1,0:T(1,128)}', space=vmem, size = 0x12000, scoped, tag = 'internal scratch']
  #allocation2 [shape = 'f32[1,1]{1,0:T(1,128)S(6)}', space=smem, size = 0x200, scoped, tag = 'scoped memory for tpu_custom_call.1']
  %s0 = inlined_call_operand.vmem [shape: f32[300,32], index: 0, kind: input, shape index: {}]
  %s1 = inlined_call_operand.vmem [shape: f32[32,256], index: 1, kind: input, shape index: {}]
  %s2 = inlined_call_operand.vmem [shape: f32[1,256], index: 2, kind: input, shape index: {}]
  %s3 = inlined_call_operand.hbm [shape: f32[256,256], index: 3, kind: input, shape index: {}]
  %s4 = inlined_call_operand.vmem [shape: f32[1,256], index: 4, kind: input, shape index: {}]
  %s5 = inlined_call_operand.vmem [shape: f32[1,256], index: 5, kind: input, shape index: {}]
  %s6 = inlined_call_operand.<no memory space> [shape: f32[1,1], index: 6, kind: input, shape index: {}]
  %s7 = inlined_call_operand.vmem [shape: f32[300,1], index: 7, kind: output, shape index: {}]
  %s8 = sld [smem:[#allocation0]]
  $region65: #{tpu_custom_call.1} parent=0
    _
  %s10 = ssub.s32 1, %s8
  %s11 = scalar_select 0, %s10, %s8
  %12 = sst [smem:[#allocation2]] %s6
  $region1: #{tpu_custom_call.1} parent=0
    #allocation3 [shape = 'u8[262144]{0}', space=vmem, size = 0x40000, scoped, tag = 'input window, operand 3, single buffered']
    #allocation4 [shape = 's32[2]{0}', space=sflag, size = 0x8, scoped, tag = 'scoped memory for tpu_custom_call.1']
    %13 = vsyncpa [#allocation4], 0
    loop: start=0, step=1, limit=4
    $region2: #{tpu_custom_call.1} parent=1 // loop_pre_header
      _
    $region3: #{tpu_custom_call.1} parent=1 // loop_header
      %s15 = sphi 0, %s19
      %p16 = scmp.ge.s32.totalorder %s15, 4
      %s25 = sphi 0, %s27
      %s28 = sphi 0, %s25
      %s29 = sphi 0, %s28
      %s45 = sphi 0, %s29
      %s49 = sphi 0, %s49
      %s51 = sphi 0, %s49
      %s52 = sphi 0, %s51
      %s66 = sphi 0, %s52
      %s70 = sphi 0, %s70
      %s72 = sphi 0, %s70
      %s73 = sphi 0, %s72
      %s87 = sphi 0, %s73
      %s91 = sphi 0, %s91
      %s93 = sphi 0, %s91
      %s94 = sphi 0, %s93
      %s108 = sphi 0, %s94
      %s112 = sphi 0, %s112
      %s114 = sphi 0, %s112
      %s115 = sphi 0, %s114
      %s129 = sphi 0, %s115
      %s133 = sphi 0, %s133
      %s135 = sphi 0, %s133
      %s136 = sphi 0, %s135
      %s150 = sphi 0, %s136
      %s154 = sphi 0, %s154
      %s156 = sphi 0, %s154
      %s157 = sphi 0, %s156
      %s171 = sphi 0, %s157
      %s177 = sphi 0, %s179
      %s180 = sphi 0, %s177
      %s181 = sphi 0, %s180
      %s197 = sphi 0, %s181
    $region4: #{tpu_custom_call.1} parent=1 // loop_header_branch
      %18 = sbr.rel (%p16) target = $region8
    $region5: #{tpu_custom_call.1} parent=1 // loop_body
      %s20 = ssub.s32 %s15, 1
      %s21 = ssub.s32 %s15, 2
      %s22 = sadd.s32 %s15, 1
      %s23 = ssub.s32 %s15, %s22
      %p24 = scmp.eq.s32.totalorder %s23, 0
      %s26 = sadd.s32 %s25, 1
      %s27 = scalar_select %p24, %s25, %s26
      %p30 = pneg %p24
      %p31 = scmp.eq.s32.totalorder %s15, 1
      %p32 = por %p30, %p31
      %p33 = scmp.ne.s32.totalorder %s25, %s28
      %p34 = scmp.eq.s32.totalorder %s15, 0
      %p35 = por %p33, %p34
      %p36 = scmp.ne.s32.totalorder %s25, %s28
      %p37 = scmp.eq.s32.totalorder %s20, 1
      %p38 = por %p36, %p37
      %p39 = scmp.ne.s32.totalorder %s28, %s29
      %p40 = scmp.eq.s32.totalorder %s20, 0
      %p41 = por %p39, %p40
      %p42 = scmp.ne.s32.totalorder %s28, %s29
      %p43 = scmp.eq.s32.totalorder %s21, 1
      %p44 = por %p42, %p43
      %p46 = scmp.ne.s32.totalorder %s29, %s45
      %p47 = scmp.eq.s32.totalorder %s21, 0
      %p48 = por %p46, %p47
      %s50 = sadd.s32 %s49, 1
      %p53 = scmp.eq.s32.totalorder %s15, 1
      %p54 = scmp.ne.s32.totalorder %s49, %s51
      %p55 = scmp.eq.s32.totalorder %s15, 0
      %p56 = por %p54, %p55
      %p57 = scmp.ne.s32.totalorder %s49, %s51
      %p58 = scmp.eq.s32.totalorder %s20, 1
      %p59 = por %p57, %p58
      %p60 = scmp.ne.s32.totalorder %s51, %s52
      %p61 = scmp.eq.s32.totalorder %s20, 0
      %p62 = por %p60, %p61
      %p63 = scmp.ne.s32.totalorder %s51, %s52
      %p64 = scmp.eq.s32.totalorder %s21, 1
      %p65 = por %p63, %p64
      %p67 = scmp.ne.s32.totalorder %s52, %s66
      %p68 = scmp.eq.s32.totalorder %s21, 0
      %p69 = por %p67, %p68
      %s71 = sadd.s32 %s70, 1
      %p74 = scmp.eq.s32.totalorder %s15, 1
      %p75 = scmp.ne.s32.totalorder %s70, %s72
      %p76 = scmp.eq.s32.totalorder %s15, 0
      %p77 = por %p75, %p76
      %p78 = scmp.ne.s32.totalorder %s70, %s72
      %p79 = scmp.eq.s32.totalorder %s20, 1
      %p80 = por %p78, %p79
      %p81 = scmp.ne.s32.totalorder %s72, %s73
      %p82 = scmp.eq.s32.totalorder %s20, 0
      %p83 = por %p81, %p82
      %p84 = scmp.ne.s32.totalorder %s72, %s73
      %p85 = scmp.eq.s32.totalorder %s21, 1
      %p86 = por %p84, %p85
      %p88 = scmp.ne.s32.totalorder %s73, %s87
      %p89 = scmp.eq.s32.totalorder %s21, 0
      %p90 = por %p88, %p89
      %s92 = sadd.s32 %s91, 1
      %p95 = scmp.eq.s32.totalorder %s15, 1
      %p96 = scmp.ne.s32.totalorder %s91, %s93
      %p97 = scmp.eq.s32.totalorder %s15, 0
      %p98 = por %p96, %p97
      %p99 = scmp.ne.s32.totalorder %s91, %s93
      %p100 = scmp.eq.s32.totalorder %s20, 1
      %p101 = por %p99, %p100
      %p102 = scmp.ne.s32.totalorder %s93, %s94
      %p103 = scmp.eq.s32.totalorder %s20, 0
      %p104 = por %p102, %p103
      %p105 = scmp.ne.s32.totalorder %s93, %s94
      %p106 = scmp.eq.s32.totalorder %s21, 1
      %p107 = por %p105, %p106
      %p109 = scmp.ne.s32.totalorder %s94, %s108
      %p110 = scmp.eq.s32.totalorder %s21, 0
      %p111 = por %p109, %p110
      %s113 = sadd.s32 %s112, 1
      %p116 = scmp.eq.s32.totalorder %s15, 1
      %p117 = scmp.ne.s32.totalorder %s112, %s114
      %p118 = scmp.eq.s32.totalorder %s15, 0
      %p119 = por %p117, %p118
      %p120 = scmp.ne.s32.totalorder %s112, %s114
      %p121 = scmp.eq.s32.totalorder %s20, 1
      %p122 = por %p120, %p121
      %p123 = scmp.ne.s32.totalorder %s114, %s115
      %p124 = scmp.eq.s32.totalorder %s20, 0
      %p125 = por %p123, %p124
      %p126 = scmp.ne.s32.totalorder %s114, %s115
      %p127 = scmp.eq.s32.totalorder %s21, 1
      %p128 = por %p126, %p127
      %p130 = scmp.ne.s32.totalorder %s115, %s129
      %p131 = scmp.eq.s32.totalorder %s21, 0
      %p132 = por %p130, %p131
      %s134 = sadd.s32 %s133, 1
      %p137 = scmp.eq.s32.totalorder %s15, 1
      %p138 = scmp.ne.s32.totalorder %s133, %s135
      %p139 = scmp.eq.s32.totalorder %s15, 0
      %p140 = por %p138, %p139
      %p141 = scmp.ne.s32.totalorder %s133, %s135
      %p142 = scmp.eq.s32.totalorder %s20, 1
      %p143 = por %p141, %p142
      %p144 = scmp.ne.s32.totalorder %s135, %s136
      %p145 = scmp.eq.s32.totalorder %s20, 0
      %p146 = por %p144, %p145
      %p147 = scmp.ne.s32.totalorder %s135, %s136
      %p148 = scmp.eq.s32.totalorder %s21, 1
      %p149 = por %p147, %p148
      %p151 = scmp.ne.s32.totalorder %s136, %s150
      %p152 = scmp.eq.s32.totalorder %s21, 0
      %p153 = por %p151, %p152
      %s155 = sadd.s32 %s154, 1
      %p158 = scmp.eq.s32.totalorder %s15, 1
      %p159 = scmp.ne.s32.totalorder %s154, %s156
      %p160 = scmp.eq.s32.totalorder %s15, 0
      %p161 = por %p159, %p160
      %p162 = scmp.ne.s32.totalorder %s154, %s156
      %p163 = scmp.eq.s32.totalorder %s20, 1
      %p164 = por %p162, %p163
      %p165 = scmp.ne.s32.totalorder %s156, %s157
      %p166 = scmp.eq.s32.totalorder %s20, 0
      %p167 = por %p165, %p166
      %p168 = scmp.ne.s32.totalorder %s156, %s157
      %p169 = scmp.eq.s32.totalorder %s21, 1
      %p170 = por %p168, %p169
      %p172 = scmp.ne.s32.totalorder %s157, %s171
      %p173 = scmp.eq.s32.totalorder %s21, 0
      %p174 = por %p172, %p173
      %s175 = ssub.s32 %s15, %s22
      %p176 = scmp.eq.s32.totalorder %s175, 0
      %s178 = sadd.s32 %s177, 1
      %s179 = scalar_select %p176, %s177, %s178
      %p182 = pneg %p176
      %p183 = scmp.eq.s32.totalorder %s15, 1
      %p184 = por %p182, %p183
      %p185 = scmp.ne.s32.totalorder %s177, %s180
      %p186 = scmp.eq.s32.totalorder %s15, 0
      %p187 = por %p185, %p186
      %p188 = scmp.ne.s32.totalorder %s177, %s180
      %p189 = scmp.eq.s32.totalorder %s20, 1
      %p190 = por %p188, %p189
      %p191 = scmp.ne.s32.totalorder %s180, %s181
      %p192 = scmp.eq.s32.totalorder %s20, 0
      %p193 = por %p191, %p192
      %p194 = scmp.ne.s32.totalorder %s180, %s181
      %p195 = scmp.eq.s32.totalorder %s21, 1
      %p196 = por %p194, %p195
      %p198 = scmp.ne.s32.totalorder %s181, %s197
      %p199 = scmp.eq.s32.totalorder %s21, 0
      %p200 = por %p198, %p199
      %p201 = scmp.le.s32.totalorder 1, %s15
      %p202 = scmp.lt.s32.totalorder %s15, 3
      %p203 = pnand %p201, %p202
      %p204 = pneg %p203
      // Predicated region
      $region9: #{tpu_custom_call.1} parent=5 // pred_check
        _
      $region10: #{tpu_custom_call.1} parent=5 // pred_check_branch
        %206 = sbr.rel (%p203) target = $region12
      $region11: #{tpu_custom_call.1} parent=5 // pred_region
        %s207 = ssub.s32 %s15, 1
        // Predicated region
        $region13: #{tpu_custom_call.1} parent=11 // pred_check
          %p208 = pneg %p62
        $region14: #{tpu_custom_call.1} parent=11 // pred_check_branch
          %210 = sbr.rel (%p208) target = $region16
        $region15: #{tpu_custom_call.1} parent=11 // pred_region
          _
        $region16: #{tpu_custom_call.1} parent=11 // pred_fallthru
          _
        // Predicated region
        $region17: #{tpu_custom_call.1} parent=11 // pred_check
          %p211 = pneg %p83
        $region18: #{tpu_custom_call.1} parent=11 // pred_check_branch
          %213 = sbr.rel (%p211) target = $region20
        $region19: #{tpu_custom_call.1} parent=11 // pred_region
          _
        $region20: #{tpu_custom_call.1} parent=11 // pred_fallthru
          _
        // Predicated region
        $region21: #{tpu_custom_call.1} parent=11 // pred_check
          %p214 = pneg %p104
        $region22: #{tpu_custom_call.1} parent=11 // pred_check_branch
          %216 = sbr.rel (%p214) target = $region24
        $region23: #{tpu_custom_call.1} parent=11 // pred_region
          %s218 = ssub.s32 8192, 8192
          %219 = vsyncadd [#allocation4], %s218
          %s220 = sshll.u32 [#allocation3], 4
          %s221 = int_to_ptr.vmem [resolvable:$true] %s220
          %226 = dma.hbm_to_vmem [thread:$0]  %s3, 8192, %s221, [#allocation4], 256, 256, 16
        $region24: #{tpu_custom_call.1} parent=11 // pred_fallthru
          _
        // Predicated region
        $region25: #{tpu_custom_call.1} parent=11 // pred_check
          %p227 = pneg %p125
        $region26: #{tpu_custom_call.1} parent=11 // pred_check_branch
          %229 = sbr.rel (%p227) target = $region28
        $region27: #{tpu_custom_call.1} parent=11 // pred_region
          _
        $region28: #{tpu_custom_call.1} parent=11 // pred_fallthru
          _
        // Predicated region
        $region29: #{tpu_custom_call.1} parent=11 // pred_check
          %p230 = pneg %p146
        $region30: #{tpu_custom_call.1} parent=11 // pred_check_branch
          %232 = sbr.rel (%p230) target = $region32
        $region31: #{tpu_custom_call.1} parent=11 // pred_region
          _
        $region32: #{tpu_custom_call.1} parent=11 // pred_fallthru
          _
        // Predicated region
        $region33: #{tpu_custom_call.1} parent=11 // pred_check
          %p233 = pneg %p167
        $region34: #{tpu_custom_call.1} parent=11 // pred_check_branch
          %235 = sbr.rel (%p233) target = $region36
        $region35: #{tpu_custom_call.1} parent=11 // pred_region
          _
        $region36: #{tpu_custom_call.1} parent=11 // pred_fallthru
          _
      $region12: #{tpu_custom_call.1} parent=5 // pred_fallthru
        _
      %p236 = scmp.lt.s32.totalorder %s15, 2
      // Predicated region
      $region37: #{tpu_custom_call.1} parent=5 // pred_check
        %p237 = pneg %p236
      $region38: #{tpu_custom_call.1} parent=5 // pred_check_branch
        %239 = sbr.rel (%p237) target = $region40
      $region39: #{tpu_custom_call.1} parent=5 // pred_region
        // Predicated region
        $region41: #{tpu_custom_call.1} parent=39 // pred_check
          %p240 = pneg %p35
        $region42: #{tpu_custom_call.1} parent=39 // pred_check_branch
          %242 = sbr.rel (%p240) target = $region44
        $region43: #{tpu_custom_call.1} parent=39 // pred_region
          %s243 = smul.u32 19, %s15
          %p244 = scmp.lt.s32.totalorder %s243, 37
          %s245 = scalar_select %p244, %s243, 37
          %s246 = smul.addr %s245, 8
          %s247 = scalar_lea.vmem %s0, %s246
          %s248 = smul.u32 19, %s15
        $region44: #{tpu_custom_call.1} parent=39 // pred_fallthru
          _
      $region40: #{tpu_custom_call.1} parent=5 // pred_fallthru
        _
      %p249 = scmp.le.s32.totalorder 1, %s15
      %p250 = scmp.lt.s32.totalorder %s15, 3
      %p251 = pnand %p249, %p250
      %p252 = pneg %p251
      // Predicated region
      $region45: #{tpu_custom_call.1} parent=5 // pred_check
        _
      $region46: #{tpu_custom_call.1} parent=5 // pred_check_branch
        %254 = sbr.rel (%p251) target = $region48
      $region47: #{tpu_custom_call.1} parent=5 // pred_region
        %s255 = ssub.s32 %s15, 1
        // Predicated region
        $region49: #{tpu_custom_call.1} parent=47 // pred_check
          %p256 = pneg %p104
        $region50: #{tpu_custom_call.1} parent=47 // pred_check_branch
          %258 = sbr.rel (%p256) target = $region52
        $region51: #{tpu_custom_call.1} parent=47 // pred_region
          %259 = dma.done [#allocation4], 8192
        $region52: #{tpu_custom_call.1} parent=47 // pred_fallthru
          _
        %s260 = smul.u32 19, %s20
        %p261 = scmp.lt.s32.totalorder %s260, 37
        %s262 = scalar_select %p261, %s260, 37
        %s263 = smul.addr %s262, 8
        %s264 = scalar_lea.vmem %s0, %s263
        %p265 = pneg %p41
        %p266 = pneg %p38
        %p267 = pneg %p62
        %p268 = pneg %p59
        %p269 = pneg %p83
        %p270 = pneg %p80
        %p271 = pneg %p104
        %p272 = pneg %p101
        %p273 = pneg %p125
        %p274 = pneg %p122
        %p275 = pneg %p146
        %p276 = pneg %p143
        %p277 = pneg %p167
        %p278 = pneg %p164
        %p279 = pneg %p193
        %p280 = pneg %p190
        %s281 = smul.u32 19, %s20
        %p282 = scmp.lt.s32.totalorder %s281, 37
        %s283 = scalar_select %p282, %s281, 37
        %s284 = smul.addr %s283, 8
        %s285 = scalar_lea.vmem %s7, %s284
        %s286 = smul.u32 19, %s20
        %p287 = scmp.lt.s32.totalorder %s286, 37
        %s288 = scalar_select %p287, %s286, 37
        %s289 = smul.addr %s288, 8
        %s290 = scalar_lea.vmem %s0, %s289
        %s291 = smul.u32 19, %s20
        %s292 = smul.u32 19, %s20
        %p293 = scmp.lt.s32.totalorder %s292, 37
        %s294 = scalar_select %p293, %s292, 37
        %s295 = smul.addr %s294, 8
        %s296 = scalar_lea.vmem %s7, %s295
        %s297 = smul.u32 19, %s20
        %v298 = vld [vmem:[%s290] sm:$0xff]
        %v299 = vld [vmem:[%s290 + $0x8] sm:$0xff]
        %v300 = vld [vmem:[%s290 + $0x10] sm:$0xff]
        %v301 = vld [vmem:[%s290 + $0x18] sm:$0xff]
        %v302 = vld [vmem:[%s290 + $0x20] sm:$0xff]
        %v303 = vld [vmem:[%s290 + $0x28] sm:$0xff]
        %v304 = vld [vmem:[%s290 + $0x30] sm:$0xff]
        %v305 = vld [vmem:[%s290 + $0x38] sm:$0xff]
        %v306 = vld [vmem:[%s290 + $0x40] sm:$0xff]
        %v307 = vld [vmem:[%s290 + $0x48] sm:$0xff]
        %v308 = vld [vmem:[%s290 + $0x50] sm:$0xff]
        %v309 = vld [vmem:[%s290 + $0x58] sm:$0xff]
        %v310 = vld [vmem:[%s290 + $0x60] sm:$0xff]
        %v311 = vld [vmem:[%s290 + $0x68] sm:$0xff]
        %v312 = vld [vmem:[%s290 + $0x70] sm:$0xff]
        %v313 = vld [vmem:[%s290 + $0x78] sm:$0xff]
        %v314 = vld [vmem:[%s290 + $0x80] sm:$0xff]
        %v315 = vld [vmem:[%s290 + $0x88] sm:$0xff]
        %v316 = vld [vmem:[%s290 + $0x90] sm:$0xff]
        %v317 = vld [vmem:[%s1] sm:$0xff]
        %v318 = vld [vmem:[%s1 + $0x8] sm:$0xff]
        %v319 = vld [vmem:[%s1 + $0x10] sm:$0xff]
        %v320 = vld [vmem:[%s1 + $0x18] sm:$0xff]
        %v321 = vld [vmem:[%s1 + $0x20] sm:$0xff]
        %v322 = vld [vmem:[%s1 + $0x28] sm:$0xff]
        %v323 = vld [vmem:[%s1 + $0x30] sm:$0xff]
        %v324 = vld [vmem:[%s1 + $0x38] sm:$0xff]
        %v325 = vld [vmem:[%s2] sm:$0x3]
        %v327 = vlaneseq
        %v328 = vshrl.u32 %v327, 7
        %v329 = vsub.s32 0, %v328
        %v330 = vrot.slane %v325, %v329
        %v331 = vlaneseq
        %v332 = vshrl.u32 %v331, 7
        %v333 = vsub.s32 1, %v332
        %v334 = vrot.slane %v325, %v333
        %vm337 = vcmask 261120
        %v339 = vsel %vm337, %v298, 0
        %v342 = vsel %vm337, %v299, 0
        %v345 = vsel %vm337, %v300, 0
        %v348 = vsel %vm337, %v301, 0
        %v351 = vsel %vm337, %v302, 0
        %v354 = vsel %vm337, %v303, 0
        %v357 = vsel %vm337, %v304, 0
        %v360 = vsel %vm337, %v305, 0
        %v363 = vsel %vm337, %v306, 0
        %v366 = vsel %vm337, %v307, 0
        %v369 = vsel %vm337, %v308, 0
        %v372 = vsel %vm337, %v309, 0
        %v375 = vsel %vm337, %v310, 0
        %v378 = vsel %vm337, %v311, 0
        %v381 = vsel %vm337, %v312, 0
        %v384 = vsel %vm337, %v313, 0
        %v387 = vsel %vm337, %v314, 0
        %v390 = vsel %vm337, %v315, 0
        %v393 = vsel %vm337, %v316, 0
        %395 = vmatprep.subr.mxu0 0.0
        %396 = vmatpush1.msra.mxu0 0.0
        %397 = vmatprep.subr.mxu0 0.0
        %398 = vmatpush1.msra.mxu0 0.0
        %399 = vmatprep.subr.mxu0 0.0
        %400 = vmatpush1.msra.mxu0 0.0
        %401 = vmatprep.subr.mxu0 0.0
        %402 = vmatpush1.msra.mxu0 0.0
        %403 = vmatprep.subr.mxu0 0.0
        %404 = vmatpush1.msra.mxu0 0.0
        %405 = vmatprep.subr.mxu0 0.0
        %406 = vmatpush1.msra.mxu0 0.0
        %407 = vmatprep.subr.mxu0 0.0
        %408 = vmatpush1.msra.mxu0 0.0
        %409 = vmatprep.subr.mxu0 0.0
        %410 = vmatpush1.msra.mxu0 0.0
        %411 = vmatprep.subr.mxu0 0.0
        %412 = vmatpush1.msra.mxu0 0.0
        %413 = vmatprep.subr.mxu0 0.0
        %414 = vmatpush1.msra.mxu0 0.0
        %415 = vmatprep.subr.mxu0 0.0
        %416 = vmatpush1.msra.mxu0 0.0
        %417 = vmatprep.subr.mxu0 0.0
        %418 = vmatpush1.msra.mxu0 0.0
        %419 = vmatprep.subr.mxu0 %v324
        %420 = vmatpush1.msra.mxu0 %v323
        %421 = vmatprep.subr.mxu0 %v322
        %422 = vmatpush1.msra.mxu0 %v321
        %423 = vmatprep.subr.mxu0 %v320
        %424 = vmatpush1.msra.mxu0 %v319
        %425 = vmatprep.subr.mxu0 %v318
        %426 = vmatpush1.msra.mxu0 %v317
        %427 = vmatprep.subr.mxu0 0.0
        %428 = vmatpush2.msra.mxu0 0.0
        %429 = vmatprep.subr.mxu0 0.0
        %430 = vmatpush2.msra.mxu0 0.0
        %431 = vmatprep.subr.mxu0 0.0
        %432 = vmatpush2.msra.mxu0 0.0
        %433 = vmatprep.subr.mxu0 0.0
        %434 = vmatpush2.msra.mxu0 0.0
        %435 = vmatprep.subr.mxu0 0.0
        %436 = vmatpush2.msra.mxu0 0.0
        %437 = vmatprep.subr.mxu0 0.0
        %438 = vmatpush2.msra.mxu0 0.0
        %439 = vmatprep.subr.mxu0 0.0
        %440 = vmatpush2.msra.mxu0 0.0
        %441 = vmatprep.subr.mxu0 0.0
        %442 = vmatpush2.msra.mxu0 0.0
        %443 = vmatprep.subr.mxu0 0.0
        %444 = vmatpush2.msra.mxu0 0.0
        %445 = vmatprep.subr.mxu0 0.0
        %446 = vmatpush2.msra.mxu0 0.0
        %447 = vmatprep.subr.mxu0 0.0
        %448 = vmatpush2.msra.mxu0 0.0
        %449 = vmatprep.subr.mxu0 0.0
        %450 = vmatpush2.msra.mxu0 0.0
        %451 = vmatprep.subr.mxu0 0.0
        %452 = vmatpush2.msra.mxu0 0.0
        %453 = vmatprep.subr.mxu0 0.0
        %454 = vmatpush2.msra.mxu0 0.0
        %455 = vmatprep.subr.mxu0 0.0
        %456 = vmatpush2.msra.mxu0 0.0
        %457 = vmatprep.subr.mxu0 0.0
        %458 = vmatpush2.msra.mxu0 0.0
        %459 = vmatprep.mubr.f32.mxu0 0.0
        %460 = vmatmul.mubr.f32.gmra.mxu0 %v339
        %v461 = vpop.f32.mrf.mxu0
        %v462 = vadd.f32 %v330, %v461
        %v463 = vpop.f32.mrf.mxu0
        %v464 = vadd.f32 %v334, %v463
        %465 = vmatprep.mubr.f32.mxu0 0.0
        %466 = vmatmul.mubr.f32.gmra.mxu0 %v342
        %v467 = vpop.f32.mrf.mxu0
        %v468 = vadd.f32 %v330, %v467
        %v469 = vpop.f32.mrf.mxu0
        %v470 = vadd.f32 %v334, %v469
        %471 = vmatprep.mubr.f32.mxu0 0.0
        %472 = vmatmul.mubr.f32.gmra.mxu0 %v345
        %v473 = vpop.f32.mrf.mxu0
        %v474 = vadd.f32 %v330, %v473
        %v475 = vpop.f32.mrf.mxu0
        %v476 = vadd.f32 %v334, %v475
        %477 = vmatprep.mubr.f32.mxu0 0.0
        %478 = vmatmul.mubr.f32.gmra.mxu0 %v348
        %v479 = vpop.f32.mrf.mxu0
        %v480 = vadd.f32 %v330, %v479
        %v481 = vpop.f32.mrf.mxu0
        %v482 = vadd.f32 %v334, %v481
        %483 = vmatprep.mubr.f32.mxu0 0.0
        %484 = vmatmul.mubr.f32.gmra.mxu0 %v351
        %v485 = vpop.f32.mrf.mxu0
        %v486 = vadd.f32 %v330, %v485
        %v487 = vpop.f32.mrf.mxu0
        %v488 = vadd.f32 %v334, %v487
        %489 = vmatprep.mubr.f32.mxu0 0.0
        %490 = vmatmul.mubr.f32.gmra.mxu0 %v354
        %v491 = vpop.f32.mrf.mxu0
        %v492 = vadd.f32 %v330, %v491
        %v493 = vpop.f32.mrf.mxu0
        %v494 = vadd.f32 %v334, %v493
        %495 = vmatprep.mubr.f32.mxu0 0.0
        %496 = vmatmul.mubr.f32.gmra.mxu0 %v357
        %v497 = vpop.f32.mrf.mxu0
        %v498 = vadd.f32 %v330, %v497
        %v499 = vpop.f32.mrf.mxu0
        %v500 = vadd.f32 %v334, %v499
        %501 = vmatprep.mubr.f32.mxu0 0.0
        %502 = vmatmul.mubr.f32.gmra.mxu0 %v360
        %v503 = vpop.f32.mrf.mxu0
        %v504 = vadd.f32 %v330, %v503
        %v505 = vpop.f32.mrf.mxu0
        %v506 = vadd.f32 %v334, %v505
        %507 = vmatprep.mubr.f32.mxu0 0.0
        %508 = vmatmul.mubr.f32.gmra.mxu0 %v363
        %v509 = vpop.f32.mrf.mxu0
        %v510 = vadd.f32 %v330, %v509
        %v511 = vpop.f32.mrf.mxu0
        %v512 = vadd.f32 %v334, %v511
        %513 = vmatprep.mubr.f32.mxu0 0.0
        %514 = vmatmul.mubr.f32.gmra.mxu0 %v366
        %v515 = vpop.f32.mrf.mxu0
        %v516 = vadd.f32 %v330, %v515
        %v517 = vpop.f32.mrf.mxu0
        %v518 = vadd.f32 %v334, %v517
        %519 = vmatprep.mubr.f32.mxu0 0.0
        %520 = vmatmul.mubr.f32.gmra.mxu0 %v369
        %v521 = vpop.f32.mrf.mxu0
        %v522 = vadd.f32 %v330, %v521
        %v523 = vpop.f32.mrf.mxu0
        %v524 = vadd.f32 %v334, %v523
        %525 = vmatprep.mubr.f32.mxu0 0.0
        %526 = vmatmul.mubr.f32.gmra.mxu0 %v372
        %v527 = vpop.f32.mrf.mxu0
        %v528 = vadd.f32 %v330, %v527
        %v529 = vpop.f32.mrf.mxu0
        %v530 = vadd.f32 %v334, %v529
        %531 = vmatprep.mubr.f32.mxu0 0.0
        %532 = vmatmul.mubr.f32.gmra.mxu0 %v375
        %v533 = vpop.f32.mrf.mxu0
        %v534 = vadd.f32 %v330, %v533
        %v535 = vpop.f32.mrf.mxu0
        %v536 = vadd.f32 %v334, %v535
        %537 = vmatprep.mubr.f32.mxu0 0.0
        %538 = vmatmul.mubr.f32.gmra.mxu0 %v378
        %v539 = vpop.f32.mrf.mxu0
        %v540 = vadd.f32 %v330, %v539
        %v541 = vpop.f32.mrf.mxu0
        %v542 = vadd.f32 %v334, %v541
        %543 = vmatprep.mubr.f32.mxu0 0.0
        %544 = vmatmul.mubr.f32.gmra.mxu0 %v381
        %v545 = vpop.f32.mrf.mxu0
        %v546 = vadd.f32 %v330, %v545
        %v547 = vpop.f32.mrf.mxu0
        %v548 = vadd.f32 %v334, %v547
        %549 = vmatprep.mubr.f32.mxu0 0.0
        %550 = vmatmul.mubr.f32.gmra.mxu0 %v384
        %v551 = vpop.f32.mrf.mxu0
        %v552 = vadd.f32 %v330, %v551
        %v553 = vpop.f32.mrf.mxu0
        %v554 = vadd.f32 %v334, %v553
        %555 = vmatprep.mubr.f32.mxu0 0.0
        %556 = vmatmul.mubr.f32.gmra.mxu0 %v387
        %v557 = vpop.f32.mrf.mxu0
        %v558 = vadd.f32 %v330, %v557
        %v559 = vpop.f32.mrf.mxu0
        %v560 = vadd.f32 %v334, %v559
        %561 = vmatprep.mubr.f32.mxu0 0.0
        %562 = vmatmul.mubr.f32.gmra.mxu0 %v390
        %v563 = vpop.f32.mrf.mxu0
        %v564 = vadd.f32 %v330, %v563
        %v565 = vpop.f32.mrf.mxu0
        %v566 = vadd.f32 %v334, %v565
        %567 = vmatprep.mubr.f32.mxu0 0.0
        %568 = vmatmul.mubr.f32.gmra.mxu0 %v393
        %v569 = vpop.f32.mrf.mxu0
        %v570 = vadd.f32 %v330, %v569
        %v571 = vpop.f32.mrf.mxu0
        %v572 = vadd.f32 %v334, %v571
        %573 = vdwg.mxu0
        %v574 = vmax.f32 %v462, 0.0
        %v575 = vmax.f32 %v464, 0.0
        %v576 = vmax.f32 %v468, 0.0
        %v577 = vmax.f32 %v470, 0.0
        %v578 = vmax.f32 %v474, 0.0
        %v579 = vmax.f32 %v476, 0.0
        %v580 = vmax.f32 %v480, 0.0
        %v581 = vmax.f32 %v482, 0.0
        %v582 = vmax.f32 %v486, 0.0
        %v583 = vmax.f32 %v488, 0.0
        %v584 = vmax.f32 %v492, 0.0
        %v585 = vmax.f32 %v494, 0.0
        %v586 = vmax.f32 %v498, 0.0
        %v587 = vmax.f32 %v500, 0.0
        %v588 = vmax.f32 %v504, 0.0
        %v589 = vmax.f32 %v506, 0.0
        %v590 = vmax.f32 %v510, 0.0
        %v591 = vmax.f32 %v512, 0.0
        %v592 = vmax.f32 %v516, 0.0
        %v593 = vmax.f32 %v518, 0.0
        %v594 = vmax.f32 %v522, 0.0
        %v595 = vmax.f32 %v524, 0.0
        %v596 = vmax.f32 %v528, 0.0
        %v597 = vmax.f32 %v530, 0.0
        %v598 = vmax.f32 %v534, 0.0
        %v599 = vmax.f32 %v536, 0.0
        %v600 = vmax.f32 %v540, 0.0
        %v601 = vmax.f32 %v542, 0.0
        %v602 = vmax.f32 %v546, 0.0
        %v603 = vmax.f32 %v548, 0.0
        %v604 = vmax.f32 %v552, 0.0
        %v605 = vmax.f32 %v554, 0.0
        %v606 = vmax.f32 %v558, 0.0
        %v607 = vmax.f32 %v560, 0.0
        %v608 = vmax.f32 %v564, 0.0
        %v609 = vmax.f32 %v566, 0.0
        %v610 = vmax.f32 %v570, 0.0
        %v611 = vmax.f32 %v572, 0.0
        %v612 = vld [vmem:[#allocation3] sm:$0xff]
        %v613 = vld [vmem:[#allocation3 + $0x8] sm:$0xff]
        %v614 = vld [vmem:[#allocation3 + $0x10] sm:$0xff]
        %v615 = vld [vmem:[#allocation3 + $0x18] sm:$0xff]
        %v616 = vld [vmem:[#allocation3 + $0x20] sm:$0xff]
        %v617 = vld [vmem:[#allocation3 + $0x28] sm:$0xff]
        %v618 = vld [vmem:[#allocation3 + $0x30] sm:$0xff]
        %v619 = vld [vmem:[#allocation3 + $0x38] sm:$0xff]
        %v620 = vld [vmem:[#allocation3 + $0x40] sm:$0xff]
        %v621 = vld [vmem:[#allocation3 + $0x48] sm:$0xff]
        %v622 = vld [vmem:[#allocation3 + $0x50] sm:$0xff]
        %v623 = vld [vmem:[#allocation3 + $0x58] sm:$0xff]
        %v624 = vld [vmem:[#allocation3 + $0x60] sm:$0xff]
        %v625 = vld [vmem:[#allocation3 + $0x68] sm:$0xff]
        %v626 = vld [vmem:[#allocation3 + $0x70] sm:$0xff]
        %v627 = vld [vmem:[#allocation3 + $0x78] sm:$0xff]
        %v628 = vld [vmem:[#allocation3 + $0x80] sm:$0xff]
        %v629 = vld [vmem:[#allocation3 + $0x88] sm:$0xff]
        %v630 = vld [vmem:[#allocation3 + $0x90] sm:$0xff]
        %v631 = vld [vmem:[#allocation3 + $0x98] sm:$0xff]
        %v632 = vld [vmem:[#allocation3 + $0xa0] sm:$0xff]
        %v633 = vld [vmem:[#allocation3 + $0xa8] sm:$0xff]
        %v634 = vld [vmem:[#allocation3 + $0xb0] sm:$0xff]
        %v635 = vld [vmem:[#allocation3 + $0xb8] sm:$0xff]
        %v636 = vld [vmem:[#allocation3 + $0xc0] sm:$0xff]
        %v637 = vld [vmem:[#allocation3 + $0xc8] sm:$0xff]
        %v638 = vld [vmem:[#allocation3 + $0xd0] sm:$0xff]
        %v639 = vld [vmem:[#allocation3 + $0xd8] sm:$0xff]
        %v640 = vld [vmem:[#allocation3 + $0xe0] sm:$0xff]
        %v641 = vld [vmem:[#allocation3 + $0xe8] sm:$0xff]
        %v642 = vld [vmem:[#allocation3 + $0xf0] sm:$0xff]
        %v643 = vld [vmem:[#allocation3 + $0xf8] sm:$0xff]
        %v644 = vld [vmem:[#allocation3 + $0x100] sm:$0xff]
        %v645 = vld [vmem:[#allocation3 + $0x108] sm:$0xff]
        %v646 = vld [vmem:[#allocation3 + $0x110] sm:$0xff]
        %v647 = vld [vmem:[#allocation3 + $0x118] sm:$0xff]
        %v648 = vld [vmem:[#allocation3 + $0x120] sm:$0xff]
        %v649 = vld [vmem:[#allocation3 + $0x128] sm:$0xff]
        %v650 = vld [vmem:[#allocation3 + $0x130] sm:$0xff]
        %v651 = vld [vmem:[#allocation3 + $0x138] sm:$0xff]
        %v652 = vld [vmem:[#allocation3 + $0x140] sm:$0xff]
        %v653 = vld [vmem:[#allocation3 + $0x148] sm:$0xff]
        %v654 = vld [vmem:[#allocation3 + $0x150] sm:$0xff]
        %v655 = vld [vmem:[#allocation3 + $0x158] sm:$0xff]
        %v656 = vld [vmem:[#allocation3 + $0x160] sm:$0xff]
        %v657 = vld [vmem:[#allocation3 + $0x168] sm:$0xff]
        %v658 = vld [vmem:[#allocation3 + $0x170] sm:$0xff]
        %v659 = vld [vmem:[#allocation3 + $0x178] sm:$0xff]
        %v660 = vld [vmem:[#allocation3 + $0x180] sm:$0xff]
        %v661 = vld [vmem:[#allocation3 + $0x188] sm:$0xff]
        %v662 = vld [vmem:[#allocation3 + $0x190] sm:$0xff]
        %v663 = vld [vmem:[#allocation3 + $0x198] sm:$0xff]
        %v664 = vld [vmem:[#allocation3 + $0x1a0] sm:$0xff]
        %v665 = vld [vmem:[#allocation3 + $0x1a8] sm:$0xff]
        %v666 = vld [vmem:[#allocation3 + $0x1b0] sm:$0xff]
        %v667 = vld [vmem:[#allocation3 + $0x1b8] sm:$0xff]
        %v668 = vld [vmem:[#allocation3 + $0x1c0] sm:$0xff]
        %v669 = vld [vmem:[#allocation3 + $0x1c8] sm:$0xff]
        %v670 = vld [vmem:[#allocation3 + $0x1d0] sm:$0xff]
        %v671 = vld [vmem:[#allocation3 + $0x1d8] sm:$0xff]
        %v672 = vld [vmem:[#allocation3 + $0x1e0] sm:$0xff]
        %v673 = vld [vmem:[#allocation3 + $0x1e8] sm:$0xff]
        %v674 = vld [vmem:[#allocation3 + $0x1f0] sm:$0xff]
        %v675 = vld [vmem:[#allocation3 + $0x1f8] sm:$0xff]
        %v676 = vld [vmem:[%s4] sm:$0x3]
        %v678 = vlaneseq
        %v679 = vshrl.u32 %v678, 7
        %v680 = vsub.s32 0, %v679
        %v681 = vrot.slane %v676, %v680
        %v682 = vlaneseq
        %v683 = vshrl.u32 %v682, 7
        %v684 = vsub.s32 1, %v683
        %v685 = vrot.slane %v676, %v684
        %688 = vmatprep.subr.mxu0 %v643
        %689 = vmatpush1.msra.mxu0 %v642
        %690 = vmatprep.subr.mxu0 %v641
        %691 = vmatpush1.msra.mxu0 %v640
        %692 = vmatprep.subr.mxu0 %v639
        %693 = vmatpush1.msra.mxu0 %v638
        %694 = vmatprep.subr.mxu0 %v637
        %695 = vmatpush1.msra.mxu0 %v636
        %696 = vmatprep.subr.mxu0 %v635
        %697 = vmatpush1.msra.mxu0 %v634
        %698 = vmatprep.subr.mxu0 %v633
        %699 = vmatpush1.msra.mxu0 %v632
        %700 = vmatprep.subr.mxu0 %v631
        %701 = vmatpush1.msra.mxu0 %v630
        %702 = vmatprep.subr.mxu0 %v629
        %703 = vmatpush1.msra.mxu0 %v628
        %704 = vmatprep.subr.mxu0 %v627
        %705 = vmatpush1.msra.mxu0 %v626
        %706 = vmatprep.subr.mxu0 %v625
        %707 = vmatpush1.msra.mxu0 %v624
        %708 = vmatprep.subr.mxu0 %v623
        %709 = vmatpush1.msra.mxu0 %v622
        %710 = vmatprep.subr.mxu0 %v621
        %711 = vmatpush1.msra.mxu0 %v620
        %712 = vmatprep.subr.mxu0 %v619
        %713 = vmatpush1.msra.mxu0 %v618
        %714 = vmatprep.subr.mxu0 %v617
        %715 = vmatpush1.msra.mxu0 %v616
        %716 = vmatprep.subr.mxu0 %v615
        %717 = vmatpush1.msra.mxu0 %v614
        %718 = vmatprep.subr.mxu0 %v613
        %719 = vmatpush1.msra.mxu0 %v612
        %720 = vmatprep.subr.mxu0 %v675
        %721 = vmatpush2.msra.mxu0 %v674
        %722 = vmatprep.subr.mxu0 %v673
        %723 = vmatpush2.msra.mxu0 %v672
        %724 = vmatprep.subr.mxu0 %v671
        %725 = vmatpush2.msra.mxu0 %v670
        %726 = vmatprep.subr.mxu0 %v669
        %727 = vmatpush2.msra.mxu0 %v668
        %728 = vmatprep.subr.mxu0 %v667
        %729 = vmatpush2.msra.mxu0 %v666
        %730 = vmatprep.subr.mxu0 %v665
        %731 = vmatpush2.msra.mxu0 %v664
        %732 = vmatprep.subr.mxu0 %v663
        %733 = vmatpush2.msra.mxu0 %v662
        %734 = vmatprep.subr.mxu0 %v661
        %735 = vmatpush2.msra.mxu0 %v660
        %736 = vmatprep.subr.mxu0 %v659
        %737 = vmatpush2.msra.mxu0 %v658
        %738 = vmatprep.subr.mxu0 %v657
        %739 = vmatpush2.msra.mxu0 %v656
        %740 = vmatprep.subr.mxu0 %v655
        %741 = vmatpush2.msra.mxu0 %v654
        %742 = vmatprep.subr.mxu0 %v653
        %743 = vmatpush2.msra.mxu0 %v652
        %744 = vmatprep.subr.mxu0 %v651
        %745 = vmatpush2.msra.mxu0 %v650
        %746 = vmatprep.subr.mxu0 %v649
        %747 = vmatpush2.msra.mxu0 %v648
        %748 = vmatprep.subr.mxu0 %v647
        %749 = vmatpush2.msra.mxu0 %v646
        %750 = vmatprep.subr.mxu0 %v645
        %751 = vmatpush2.msra.mxu0 %v644
        %752 = vmatprep.mubr.f32.mxu0 %v575
        %753 = vmatmul.mubr.f32.gmra.mxu0 %v574
        %v754 = vpop.f32.mrf.mxu0
        %v755 = vadd.f32 %v681, %v754
        %v756 = vpop.f32.mrf.mxu0
        %v757 = vadd.f32 %v685, %v756
        %758 = vmatprep.mubr.f32.mxu0 %v577
        %759 = vmatmul.mubr.f32.gmra.mxu0 %v576
        %v760 = vpop.f32.mrf.mxu0
        %v761 = vadd.f32 %v681, %v760
        %v762 = vpop.f32.mrf.mxu0
        %v763 = vadd.f32 %v685, %v762
        %764 = vmatprep.mubr.f32.mxu0 %v579
        %765 = vmatmul.mubr.f32.gmra.mxu0 %v578
        %v766 = vpop.f32.mrf.mxu0
        %v767 = vadd.f32 %v681, %v766
        %v768 = vpop.f32.mrf.mxu0
        %v769 = vadd.f32 %v685, %v768
        %770 = vmatprep.mubr.f32.mxu0 %v581
        %771 = vmatmul.mubr.f32.gmra.mxu0 %v580
        %v772 = vpop.f32.mrf.mxu0
        %v773 = vadd.f32 %v681, %v772
        %v774 = vpop.f32.mrf.mxu0
        %v775 = vadd.f32 %v685, %v774
        %776 = vmatprep.mubr.f32.mxu0 %v583
        %777 = vmatmul.mubr.f32.gmra.mxu0 %v582
        %v778 = vpop.f32.mrf.mxu0
        %v779 = vadd.f32 %v681, %v778
        %v780 = vpop.f32.mrf.mxu0
        %v781 = vadd.f32 %v685, %v780
        %782 = vmatprep.mubr.f32.mxu0 %v585
        %783 = vmatmul.mubr.f32.gmra.mxu0 %v584
        %v784 = vpop.f32.mrf.mxu0
        %v785 = vadd.f32 %v681, %v784
        %v786 = vpop.f32.mrf.mxu0
        %v787 = vadd.f32 %v685, %v786
        %788 = vmatprep.mubr.f32.mxu0 %v587
        %789 = vmatmul.mubr.f32.gmra.mxu0 %v586
        %v790 = vpop.f32.mrf.mxu0
        %v791 = vadd.f32 %v681, %v790
        %v792 = vpop.f32.mrf.mxu0
        %v793 = vadd.f32 %v685, %v792
        %794 = vmatprep.mubr.f32.mxu0 %v589
        %795 = vmatmul.mubr.f32.gmra.mxu0 %v588
        %v796 = vpop.f32.mrf.mxu0
        %v797 = vadd.f32 %v681, %v796
        %v798 = vpop.f32.mrf.mxu0
        %v799 = vadd.f32 %v685, %v798
        %800 = vmatprep.mubr.f32.mxu0 %v591
        %801 = vmatmul.mubr.f32.gmra.mxu0 %v590
        %v802 = vpop.f32.mrf.mxu0
        %v803 = vadd.f32 %v681, %v802
        %v804 = vpop.f32.mrf.mxu0
        %v805 = vadd.f32 %v685, %v804
        %806 = vmatprep.mubr.f32.mxu0 %v593
        %807 = vmatmul.mubr.f32.gmra.mxu0 %v592
        %v808 = vpop.f32.mrf.mxu0
        %v809 = vadd.f32 %v681, %v808
        %v810 = vpop.f32.mrf.mxu0
        %v811 = vadd.f32 %v685, %v810
        %812 = vmatprep.mubr.f32.mxu0 %v595
        %813 = vmatmul.mubr.f32.gmra.mxu0 %v594
        %v814 = vpop.f32.mrf.mxu0
        %v815 = vadd.f32 %v681, %v814
        %v816 = vpop.f32.mrf.mxu0
        %v817 = vadd.f32 %v685, %v816
        %818 = vmatprep.mubr.f32.mxu0 %v597
        %819 = vmatmul.mubr.f32.gmra.mxu0 %v596
        %v820 = vpop.f32.mrf.mxu0
        %v821 = vadd.f32 %v681, %v820
        %v822 = vpop.f32.mrf.mxu0
        %v823 = vadd.f32 %v685, %v822
        %824 = vmatprep.mubr.f32.mxu0 %v599
        %825 = vmatmul.mubr.f32.gmra.mxu0 %v598
        %v826 = vpop.f32.mrf.mxu0
        %v827 = vadd.f32 %v681, %v826
        %v828 = vpop.f32.mrf.mxu0
        %v829 = vadd.f32 %v685, %v828
        %830 = vmatprep.mubr.f32.mxu0 %v601
        %831 = vmatmul.mubr.f32.gmra.mxu0 %v600
        %v832 = vpop.f32.mrf.mxu0
        %v833 = vadd.f32 %v681, %v832
        %v834 = vpop.f32.mrf.mxu0
        %v835 = vadd.f32 %v685, %v834
        %836 = vmatprep.mubr.f32.mxu0 %v603
        %837 = vmatmul.mubr.f32.gmra.mxu0 %v602
        %v838 = vpop.f32.mrf.mxu0
        %v839 = vadd.f32 %v681, %v838
        %v840 = vpop.f32.mrf.mxu0
        %v841 = vadd.f32 %v685, %v840
        %842 = vmatprep.mubr.f32.mxu0 %v605
        %843 = vmatmul.mubr.f32.gmra.mxu0 %v604
        %v844 = vpop.f32.mrf.mxu0
        %v845 = vadd.f32 %v681, %v844
        %v846 = vpop.f32.mrf.mxu0
        %v847 = vadd.f32 %v685, %v846
        %848 = vmatprep.mubr.f32.mxu0 %v607
        %849 = vmatmul.mubr.f32.gmra.mxu0 %v606
        %v850 = vpop.f32.mrf.mxu0
        %v851 = vadd.f32 %v681, %v850
        %v852 = vpop.f32.mrf.mxu0
        %v853 = vadd.f32 %v685, %v852
        %854 = vmatprep.mubr.f32.mxu0 %v609
        %855 = vmatmul.mubr.f32.gmra.mxu0 %v608
        %v856 = vpop.f32.mrf.mxu0
        %v857 = vadd.f32 %v681, %v856
        %v858 = vpop.f32.mrf.mxu0
        %v859 = vadd.f32 %v685, %v858
        %860 = vmatprep.mubr.f32.mxu0 %v611
        %861 = vmatmul.mubr.f32.gmra.mxu0 %v610
        %v862 = vpop.f32.mrf.mxu0
        %v863 = vadd.f32 %v681, %v862
        %v864 = vpop.f32.mrf.mxu0
        %v865 = vadd.f32 %v685, %v864
        %866 = vdwg.mxu0
        %v867 = vmax.f32 %v755, 0.0
        %v868 = vmax.f32 %v757, 0.0
        %v869 = vmax.f32 %v761, 0.0
        %v870 = vmax.f32 %v763, 0.0
        %v871 = vmax.f32 %v767, 0.0
        %v872 = vmax.f32 %v769, 0.0
        %v873 = vmax.f32 %v773, 0.0
        %v874 = vmax.f32 %v775, 0.0
        %v875 = vmax.f32 %v779, 0.0
        %v876 = vmax.f32 %v781, 0.0
        %v877 = vmax.f32 %v785, 0.0
        %v878 = vmax.f32 %v787, 0.0
        %v879 = vmax.f32 %v791, 0.0
        %v880 = vmax.f32 %v793, 0.0
        %v881 = vmax.f32 %v797, 0.0
        %v882 = vmax.f32 %v799, 0.0
        %v883 = vmax.f32 %v803, 0.0
        %v884 = vmax.f32 %v805, 0.0
        %v885 = vmax.f32 %v809, 0.0
        %v886 = vmax.f32 %v811, 0.0
        %v887 = vmax.f32 %v815, 0.0
        %v888 = vmax.f32 %v817, 0.0
        %v889 = vmax.f32 %v821, 0.0
        %v890 = vmax.f32 %v823, 0.0
        %v891 = vmax.f32 %v827, 0.0
        %v892 = vmax.f32 %v829, 0.0
        %v893 = vmax.f32 %v833, 0.0
        %v894 = vmax.f32 %v835, 0.0
        %v895 = vmax.f32 %v839, 0.0
        %v896 = vmax.f32 %v841, 0.0
        %v897 = vmax.f32 %v845, 0.0
        %v898 = vmax.f32 %v847, 0.0
        %v899 = vmax.f32 %v851, 0.0
        %v900 = vmax.f32 %v853, 0.0
        %v901 = vmax.f32 %v857, 0.0
        %v902 = vmax.f32 %v859, 0.0
        %v903 = vmax.f32 %v863, 0.0
        %v904 = vmax.f32 %v865, 0.0
        %v905 = vld [vmem:[%s5] sm:$0x3]
        %v907 = vlaneseq
        %v908 = vshrl.u32 %v907, 7
        %v909 = vsub.s32 0, %v908
        %v910 = vrot.slane %v905, %v909
        %v911 = vlaneseq
        %v912 = vshrl.u32 %v911, 7
        %v913 = vsub.s32 1, %v912
        %v914 = vrot.slane %v905, %v913
        %v917 = vmul.f32 %v867, %v910
        %v918 = vmul.f32 %v868, %v914
        %v919 = vmul.f32 %v869, %v910
        %v920 = vmul.f32 %v870, %v914
        %v921 = vmul.f32 %v871, %v910
        %v922 = vmul.f32 %v872, %v914
        %v923 = vmul.f32 %v873, %v910
        %v924 = vmul.f32 %v874, %v914
        %v925 = vmul.f32 %v875, %v910
        %v926 = vmul.f32 %v876, %v914
        %v927 = vmul.f32 %v877, %v910
        %v928 = vmul.f32 %v878, %v914
        %v929 = vmul.f32 %v879, %v910
        %v930 = vmul.f32 %v880, %v914
        %v931 = vmul.f32 %v881, %v910
        %v932 = vmul.f32 %v882, %v914
        %v933 = vmul.f32 %v883, %v910
        %v934 = vmul.f32 %v884, %v914
        %v935 = vmul.f32 %v885, %v910
        %v936 = vmul.f32 %v886, %v914
        %v937 = vmul.f32 %v887, %v910
        %v938 = vmul.f32 %v888, %v914
        %v939 = vmul.f32 %v889, %v910
        %v940 = vmul.f32 %v890, %v914
        %v941 = vmul.f32 %v891, %v910
        %v942 = vmul.f32 %v892, %v914
        %v943 = vmul.f32 %v893, %v910
        %v944 = vmul.f32 %v894, %v914
        %v945 = vmul.f32 %v895, %v910
        %v946 = vmul.f32 %v896, %v914
        %v947 = vmul.f32 %v897, %v910
        %v948 = vmul.f32 %v898, %v914
        %v949 = vmul.f32 %v899, %v910
        %v950 = vmul.f32 %v900, %v914
        %v951 = vmul.f32 %v901, %v910
        %v952 = vmul.f32 %v902, %v914
        %v953 = vmul.f32 %v903, %v910
        %v954 = vmul.f32 %v904, %v914
        %v955 = vadd.f32 %v917, %v918
        %v956 = vadd.f32 %v919, %v920
        %v957 = vadd.f32 %v921, %v922
        %v958 = vadd.f32 %v923, %v924
        %v959 = vadd.f32 %v925, %v926
        %v960 = vadd.f32 %v927, %v928
        %v961 = vadd.f32 %v929, %v930
        %v962 = vadd.f32 %v931, %v932
        %v963 = vadd.f32 %v933, %v934
        %v964 = vadd.f32 %v935, %v936
        %v965 = vadd.f32 %v937, %v938
        %v966 = vadd.f32 %v939, %v940
        %v967 = vadd.f32 %v941, %v942
        %v968 = vadd.f32 %v943, %v944
        %v969 = vadd.f32 %v945, %v946
        %v970 = vadd.f32 %v947, %v948
        %v971 = vadd.f32 %v949, %v950
        %v972 = vadd.f32 %v951, %v952
        %v973 = vadd.f32 %v953, %v954
        %974 = vadd.xlane.f32.xlu0 %v955
        %v975 = vpop.xlane.xlu0 %974
        %976 = vadd.xlane.f32.xlu0 %v956
        %v977 = vpop.xlane.xlu0 %976
        %978 = vadd.xlane.f32.xlu0 %v957
        %v979 = vpop.xlane.xlu0 %978
        %980 = vadd.xlane.f32.xlu0 %v958
        %v981 = vpop.xlane.xlu0 %980
        %982 = vadd.xlane.f32.xlu0 %v959
        %v983 = vpop.xlane.xlu0 %982
        %984 = vadd.xlane.f32.xlu0 %v960
        %v985 = vpop.xlane.xlu0 %984
        %986 = vadd.xlane.f32.xlu0 %v961
        %v987 = vpop.xlane.xlu0 %986
        %988 = vadd.xlane.f32.xlu0 %v962
        %v989 = vpop.xlane.xlu0 %988
        %990 = vadd.xlane.f32.xlu0 %v963
        %v991 = vpop.xlane.xlu0 %990
        %992 = vadd.xlane.f32.xlu0 %v964
        %v993 = vpop.xlane.xlu0 %992
        %994 = vadd.xlane.f32.xlu0 %v965
        %v995 = vpop.xlane.xlu0 %994
        %996 = vadd.xlane.f32.xlu0 %v966
        %v997 = vpop.xlane.xlu0 %996
        %998 = vadd.xlane.f32.xlu0 %v967
        %v999 = vpop.xlane.xlu0 %998
        %1000 = vadd.xlane.f32.xlu0 %v968
        %v1001 = vpop.xlane.xlu0 %1000
        %1002 = vadd.xlane.f32.xlu0 %v969
        %v1003 = vpop.xlane.xlu0 %1002
        %1004 = vadd.xlane.f32.xlu0 %v970
        %v1005 = vpop.xlane.xlu0 %1004
        %1006 = vadd.xlane.f32.xlu0 %v971
        %v1007 = vpop.xlane.xlu0 %1006
        %1008 = vadd.xlane.f32.xlu0 %v972
        %v1009 = vpop.xlane.xlu0 %1008
        %1010 = vadd.xlane.f32.xlu0 %v973
        %v1011 = vpop.xlane.xlu0 %1010
        %s1012 = sld [smem:[#allocation2]]
        %v1013 = vstv %s1012
        %v1014 = vadd.f32 %v975, %v1013
        %v1015 = vadd.f32 %v977, %v1013
        %v1016 = vadd.f32 %v979, %v1013
        %v1017 = vadd.f32 %v981, %v1013
        %v1018 = vadd.f32 %v983, %v1013
        %v1019 = vadd.f32 %v985, %v1013
        %v1020 = vadd.f32 %v987, %v1013
        %v1021 = vadd.f32 %v989, %v1013
        %v1022 = vadd.f32 %v991, %v1013
        %v1023 = vadd.f32 %v993, %v1013
        %v1024 = vadd.f32 %v995, %v1013
        %v1025 = vadd.f32 %v997, %v1013
        %v1026 = vadd.f32 %v999, %v1013
        %v1027 = vadd.f32 %v1001, %v1013
        %v1028 = vadd.f32 %v1003, %v1013
        %v1029 = vadd.f32 %v1005, %v1013
        %v1030 = vadd.f32 %v1007, %v1013
        %v1031 = vadd.f32 %v1009, %v1013
        %v1032 = vadd.f32 %v1011, %v1013
        %vm1033 = vcmask 7168
        %1034 = vst.msk [vmem:[%s296] sm:$0xff] %vm1033, %v1014
        %1035 = vst.msk [vmem:[%s296 + $0x8] sm:$0xff] %vm1033, %v1015
        %1036 = vst.msk [vmem:[%s296 + $0x10] sm:$0xff] %vm1033, %v1016
        %1037 = vst.msk [vmem:[%s296 + $0x18] sm:$0xff] %vm1033, %v1017
        %1038 = vst.msk [vmem:[%s296 + $0x20] sm:$0xff] %vm1033, %v1018
        %1039 = vst.msk [vmem:[%s296 + $0x28] sm:$0xff] %vm1033, %v1019
        %1040 = vst.msk [vmem:[%s296 + $0x30] sm:$0xff] %vm1033, %v1020
        %1041 = vst.msk [vmem:[%s296 + $0x38] sm:$0xff] %vm1033, %v1021
        %1042 = vst.msk [vmem:[%s296 + $0x40] sm:$0xff] %vm1033, %v1022
        %1043 = vst.msk [vmem:[%s296 + $0x48] sm:$0xff] %vm1033, %v1023
        %1044 = vst.msk [vmem:[%s296 + $0x50] sm:$0xff] %vm1033, %v1024
        %1045 = vst.msk [vmem:[%s296 + $0x58] sm:$0xff] %vm1033, %v1025
        %1046 = vst.msk [vmem:[%s296 + $0x60] sm:$0xff] %vm1033, %v1026
        %1047 = vst.msk [vmem:[%s296 + $0x68] sm:$0xff] %vm1033, %v1027
        %1048 = vst.msk [vmem:[%s296 + $0x70] sm:$0xff] %vm1033, %v1028
        %1049 = vst.msk [vmem:[%s296 + $0x78] sm:$0xff] %vm1033, %v1029
        %1050 = vst.msk [vmem:[%s296 + $0x80] sm:$0xff] %vm1033, %v1030
        %1051 = vst.msk [vmem:[%s296 + $0x88] sm:$0xff] %vm1033, %v1031
        %1052 = vst.msk [vmem:[%s296 + $0x90] sm:$0xff] %vm1033, %v1032
        %s1053 = smul.u32 19, %s20
        %p1054 = scmp.lt.s32.totalorder %s1053, 37
        %s1055 = scalar_select %p1054, %s1053, 37
        %s1056 = smul.addr %s1055, 8
        %s1057 = scalar_lea.vmem %s7, %s1056
        // Predicated region
        $region53: #{tpu_custom_call.1} parent=47 // pred_check
          %p1058 = pneg %p190
        $region54: #{tpu_custom_call.1} parent=47 // pred_check_branch
          %1060 = sbr.rel (%p1058) target = $region56
        $region55: #{tpu_custom_call.1} parent=47 // pred_region
          %s1061 = smul.u32 19, %s20
        $region56: #{tpu_custom_call.1} parent=47 // pred_fallthru
          _
      $region48: #{tpu_custom_call.1} parent=5 // pred_fallthru
        _
      %p1062 = scmp.le.s32.totalorder 2, %s15
      // Predicated region
      $region57: #{tpu_custom_call.1} parent=5 // pred_check
        %p1063 = pneg %p1062
      $region58: #{tpu_custom_call.1} parent=5 // pred_check_branch
        %1065 = sbr.rel (%p1063) target = $region60
      $region59: #{tpu_custom_call.1} parent=5 // pred_region
        %s1066 = ssub.s32 %s15, 2
        // Predicated region
        $region61: #{tpu_custom_call.1} parent=59 // pred_check
          %p1067 = pneg %p196
        $region62: #{tpu_custom_call.1} parent=59 // pred_check_branch
          %1069 = sbr.rel (%p1067) target = $region64
        $region63: #{tpu_custom_call.1} parent=59 // pred_region
          %s1070 = smul.u32 19, %s21
          %p1071 = scmp.lt.s32.totalorder %s1070, 37
          %s1072 = scalar_select %p1071, %s1070, 37
          %s1073 = smul.addr %s1072, 8
          %s1074 = scalar_lea.vmem %s7, %s1073
        $region64: #{tpu_custom_call.1} parent=59 // pred_fallthru
          _
      $region60: #{tpu_custom_call.1} parent=5 // pred_fallthru
        _
    $region6: #{tpu_custom_call.1} parent=1 // loop_footer
      %s19 = sadd.s32 1, %s15
    $region7: #{tpu_custom_call.1} parent=1 // loop_footer_branch
      %14 = sbr.rel target = $region3
    $region8: #{tpu_custom_call.1} parent=1 // loop_exit
      _
    %1075 = vsyncpa [#allocation4], 1
    %s1076 = scalar_lea.sflag [#allocation4], 1
    %1077 = vsyncpa %s1076, 1

</llo_original>
